<compile_context>
chip_gen: v7x
topology: tpu7x:2x2x1
jax: 0.10.0
libtpu: 0.0.40
codegen_flags: <defaults>
</compile_context>

<pallas_src>
import functools
import math

import jax
import jax.numpy as jnp
from jax.experimental import pallas as pl
from jax.experimental.pallas import tpu as pltpu


COMPUTE_DTYPE = jnp.bfloat16

# Tile targets: 256-aligned M/N and 512 K tiles (MXU-shaped on v6e/v7x, still
# 128-aligned for v5e); tiles clamp to the full dim for small problems so the
# (8,128) BlockSpec rule is always satisfied without padding tiny arrays.
TM_TARGET = 256
TN_TARGET = 256
TK_TARGET = 512
ATTN_TILE = 256
LN_TILE = 512


# ----------------------------- helpers -----------------------------

def _round_up(x, m):
    return (x + m - 1) // m * m


def _tile_and_pad(dim, target):
    """Return (tile, padded_dim). tile == dim when dim <= target (no padding)."""
    if dim <= target:
        return dim, dim
    return target, _round_up(dim, target)


def _pad_to(a, shape):
    pads = [(0, s - d) for d, s in zip(a.shape, shape)]
    if all(p == (0, 0) for p in pads):
        return a
    return jnp.pad(a, pads)


# ----------------------------- fused tiled matmul -----------------------------

def _matmul_kernel(*refs, activation, gated, k_steps):
    if gated:
        x_ref, w_ref, b_ref, gate_ref, res_ref, o_ref, acc_ref = refs
    else:
        x_ref, w_ref, b_ref, o_ref, acc_ref = refs

    k = pl.program_id(3)

    @pl.when(k == 0)
    def _init():
        acc_ref[...] = jnp.zeros_like(acc_ref)

    acc_ref[...] += jnp.dot(x_ref[0], w_ref[...],
                            preferred_element_type=jnp.float32)

    @pl.when(k == k_steps - 1)
    def _finalize():
        y = acc_ref[...] + b_ref[...].astype(jnp.float32)
        if activation == "gelu":
            y = jax.nn.gelu(y, approximate=True)
        elif activation == "silu":
            y = y * jax.nn.sigmoid(y)
        if gated:
            y = res_ref[0].astype(jnp.float32) + gate_ref[0].astype(jnp.float32) * y
        o_ref[0] = y.astype(o_ref.dtype)


def _tiled_matmul(x3, w, b, *, gate=None, residual=None, activation=None,
                  out_dtype=None):
    """x3: (B, N, K) @ w: (K, F) + b: (F,).
    Optional fused epilogue: activation, then residual + gate * y (gate per (B, F))."""
    B, N, K = x3.shape
    F = w.shape[1]

    tm, Np = _tile_and_pad(N, TM_TARGET)
    tn, Fp = _tile_and_pad(F, TN_TARGET)
    tk, Kp = _tile_and_pad(K, TK_TARGET)
    k_steps = Kp // tk

    xp = _pad_to(x3, (B, Np, Kp)).astype(COMPUTE_DTYPE)
    wp = _pad_to(w, (Kp, Fp)).astype(COMPUTE_DTYPE)
    bp = _pad_to(b.reshape(1, F), (1, Fp)).astype(jnp.float32)

    args = [xp, wp, bp]
    in_specs = [
        pl.BlockSpec((1, tm, tk), lambda bi, i, j, k: (bi, i, k)),
        pl.BlockSpec((tk, tn), lambda bi, i, j, k: (k, j)),
        pl.BlockSpec((1, tn), lambda bi, i, j, k: (0, j)),
    ]

    gated = gate is not None
    if gated:
        gp = _pad_to(gate.reshape(B, 1, F), (B, 1, Fp)).astype(jnp.float32)
        rp = _pad_to(residual, (B, Np, Fp)).astype(COMPUTE_DTYPE)
        args += [gp, rp]
        in_specs += [
            pl.BlockSpec((1, 1, tn), lambda bi, i, j, k: (bi, 0, j)),
            pl.BlockSpec((1, tm, tn), lambda bi, i, j, k: (bi, i, j)),
        ]

    out_dtype = out_dtype or COMPUTE_DTYPE
    out = pl.pallas_call(
        functools.partial(_matmul_kernel, activation=activation, gated=gated,
                          k_steps=k_steps),
        out_shape=jax.ShapeDtypeStruct((B, Np, Fp), out_dtype),
        grid=(B, Np // tm, Fp // tn, k_steps),
        in_specs=in_specs,
        out_specs=pl.BlockSpec((1, tm, tn), lambda bi, i, j, k: (bi, i, j)),
        scratch_shapes=[pltpu.VMEM((tm, tn), jnp.float32)],
        compiler_params=pltpu.CompilerParams(
            dimension_semantics=("parallel", "parallel", "parallel", "arbitrary")),
    )(*args)
    return out[:, :N, :F]


def linear(x, w, b, *, activation=None, out_dtype=None):
    """x: (..., K) @ w: (K, F) + b.  Leading dims collapsed into one big M tile."""
    lead = x.shape[:-1]
    K = x.shape[-1]
    M = int(math.prod(lead)) if lead else 1
    out = _tiled_matmul(x.reshape(1, M, K), w, b, activation=activation,
                        out_dtype=out_dtype)
    return out.reshape(*lead, w.shape[1])


def linear_gated(x, w, b, gate, residual, *, out_dtype=None):
    """(B, N, K) @ w + b, then  residual + gate[:, None, :] * y  fused in-epilogue."""
    return _tiled_matmul(x, w, b, gate=gate, residual=residual,
                         out_dtype=out_dtype)


# ----------------------------- flash attention -----------------------------

def _flash_attn_kernel(q_ref, k_ref, v_ref, o_ref, m_ref, l_ref, acc_ref,
                       *, scale, kv_steps, seq_len, block_k, masked):
    ki = pl.program_id(3)

    @pl.when(ki == 0)
    def _init():
        m_ref[...] = jnp.full_like(m_ref, -1e30)
        l_ref[...] = jnp.zeros_like(l_ref)
        acc_ref[...] = jnp.zeros_like(acc_ref)

    q = q_ref[0, 0]            # (tq, Dh) bf16
    k = k_ref[0, 0]            # (tk, Dh) bf16
    v = v_ref[0, 0]            # (tk, Dh) bf16

    s = jax.lax.dot_general(q, k, (((1,), (1,)), ((), ())),
                            preferred_element_type=jnp.float32) * scale  # (tq, tk)
    if masked:
        kpos = ki * block_k + jax.lax.broadcasted_iota(jnp.int32, s.shape, 1)
        s = jnp.where(kpos < seq_len, s, -1e30)

    m_prev = m_ref[...]
    m_new = jnp.maximum(m_prev, jnp.max(s, axis=-1, keepdims=True))
    alpha = jnp.exp(m_prev - m_new)
    p = jnp.exp(s - m_new)
    l_ref[...] = alpha * l_ref[...] + jnp.sum(p, axis=-1, keepdims=True)
    acc_ref[...] = alpha * acc_ref[...] + jnp.dot(
        p.astype(v.dtype), v, preferred_element_type=jnp.float32)
    m_ref[...] = m_new

    @pl.when(ki == kv_steps - 1)
    def _finalize():
        o_ref[0, 0] = (acc_ref[...] *
                       pl.reciprocal(l_ref[...], approx=True)).astype(o_ref.dtype)


def flash_attention(q, k, v):
    """q, k, v: (B, H, N, Dh) -> (B, H, N, Dh). Non-causal, no mask, online softmax."""
    B, H, N, Dh = q.shape
    scale = 1.0 / math.sqrt(Dh)

    tile, Np = _tile_and_pad(N, ATTN_TILE)
    masked = Np != N
    qp = _pad_to(q, (B, H, Np, Dh)).astype(COMPUTE_DTYPE)
    kp = _pad_to(k, (B, H, Np, Dh)).astype(COMPUTE_DTYPE)
    vp = _pad_to(v, (B, H, Np, Dh)).astype(COMPUTE_DTYPE)
    kv_steps = Np // tile

    qspec = pl.BlockSpec((1, 1, tile, Dh), lambda b, h, qi, ki: (b, h, qi, 0))
    kvspec = pl.BlockSpec((1, 1, tile, Dh), lambda b, h, qi, ki: (b, h, ki, 0))

    out = pl.pallas_call(
        functools.partial(_flash_attn_kernel, scale=scale, kv_steps=kv_steps,
                          seq_len=N, block_k=tile, masked=masked),
        out_shape=jax.ShapeDtypeStruct((B, H, Np, Dh), COMPUTE_DTYPE),
        grid=(B, H, Np // tile, kv_steps),
        in_specs=[qspec, kvspec, kvspec],
        out_specs=qspec,
        scratch_shapes=[pltpu.VMEM((tile, 1), jnp.float32),
                        pltpu.VMEM((tile, 1), jnp.float32),
                        pltpu.VMEM((tile, Dh), jnp.float32)],
        compiler_params=pltpu.CompilerParams(
            dimension_semantics=("parallel", "parallel", "parallel", "arbitrary")),
    )(qp, kp, vp)
    return out[:, :, :N, :]


# ----------------------------- adaLN modulate -----------------------------

def _adaln_kernel(x_ref, scale_ref, shift_ref, o_ref, *, eps):
    x = x_ref[0].astype(jnp.float32)                              # (tm, D)
    mean = jnp.mean(x, axis=-1, keepdims=True)
    var = jnp.mean(jnp.square(x - mean), axis=-1, keepdims=True)
    xn = (x - mean) * jax.lax.rsqrt(var + eps)
    y = xn * (1.0 + scale_ref[0].astype(jnp.float32)) + shift_ref[0].astype(jnp.float32)
    o_ref[0] = y.astype(o_ref.dtype)


def adaln_modulate(x, scale, shift, eps=1e-6):
    """x: (B, N, D); scale, shift: (B, D).  LN(x, no affine)*(1+scale)+shift."""
    B, N, D = x.shape
    tm, Np = _tile_and_pad(N, LN_TILE)
    xp = _pad_to(x, (B, Np, D))
    out = pl.pallas_call(
        functools.partial(_adaln_kernel, eps=eps),
        out_shape=jax.ShapeDtypeStruct((B, Np, D), x.dtype),
        grid=(B, Np // tm),
        in_specs=[
            pl.BlockSpec((1, tm, D), lambda b, i: (b, i, 0)),
            pl.BlockSpec((1, 1, D), lambda b, i: (b, 0, 0)),
            pl.BlockSpec((1, 1, D), lambda b, i: (b, 0, 0)),
        ],
        out_specs=pl.BlockSpec((1, tm, D), lambda b, i: (b, i, 0)),
        compiler_params=pltpu.CompilerParams(
            dimension_semantics=("parallel", "parallel")),
    )(xp, scale.reshape(B, 1, D), shift.reshape(B, 1, D))
    return out[:, :N, :]


# ----------------------------- JAX glue ops -----------------------------

def silu(x):
    return x * jax.nn.sigmoid(x)


def rope_cos_sin(seq_len, dim_head, theta=10000.0):
    """cos/sin tables (N, Dh/2), rotary_embedding_torch interleaved-pair convention."""
    inv_freq = 1.0 / (theta ** (jnp.arange(0, dim_head, 2, dtype=jnp.float32) / dim_head))
    t = jnp.arange(seq_len, dtype=jnp.float32)
    freqs = jnp.outer(t, inv_freq)                 # (N, Dh/2)
    return jnp.cos(freqs), jnp.sin(freqs)


def apply_rope(x, cos, sin):
    """x: (B, N, H, Dh) rotated per-head with interleaved pairs (rot_dim == Dh)."""
    B, N, H, Dh = x.shape
    xf = x.astype(jnp.float32).reshape(B, N, H, Dh // 2, 2)
    x1, x2 = xf[..., 0], xf[..., 1]
    c = cos[None, :, None, :]
    s = sin[None, :, None, :]
    o1 = x1 * c - x2 * s
    o2 = x1 * s + x2 * c
    out = jnp.stack([o1, o2], axis=-1).reshape(B, N, H, Dh)
    return out.astype(x.dtype)


# ----------------------------- Parameters -----------------------------

def init_params(key, *, dim, depth, heads, dim_head, ff_mult, mel_dim,
                text_num_embeds, text_dim):
    keys = iter(jax.random.split(key, 16 + 16 * depth))

    def dense(shape, scale=0.02):
        return (jax.random.normal(next(keys), shape, jnp.float32) * scale).astype(COMPUTE_DTYPE)

    def zeros(shape):
        return jnp.zeros(shape, jnp.float32)

    inner = heads * dim_head
    ff_inner = dim * ff_mult
    proj_in = mel_dim + 128 + 192 + text_dim          # InputEmbedding.proj input dim

    params = dict(
        time_mlp1_w=dense((256, dim)), time_mlp1_b=zeros((dim,)),
        time_mlp2_w=dense((dim, dim)), time_mlp2_b=zeros((dim,)),
        text_embed_table=dense((text_num_embeds + 1, text_dim)),
        spk_enc_w=dense((80, 128)), spk_enc_b=zeros((128,)),
        proj_w=dense((proj_in, dim)), proj_b=zeros((dim,)),
        norm_out_w=dense((dim, 2 * dim)), norm_out_b=zeros((2 * dim,)),
        proj_out_w=dense((dim, mel_dim)), proj_out_b=zeros((mel_dim,)),
        blocks=[],
    )
    for _ in range(depth):
        params["blocks"].append(dict(
            adaln_w=dense((dim, 6 * dim)), adaln_b=zeros((6 * dim,)),
            qkv_w=dense((dim, 3 * inner)), qkv_b=zeros((3 * inner,)),
            o_w=dense((inner, dim)), o_b=zeros((dim,)),
            ff1_w=dense((dim, ff_inner)), ff1_b=zeros((ff_inner,)),
            ff2_w=dense((ff_inner, dim)), ff2_b=zeros((dim,)),
        ))
    return params


# ----------------------------- Model forward -----------------------------

def dit_block(x, t_act, cos, sin, blk, *, heads, dim_head):
    B, N, dim = x.shape
    inner = heads * dim_head

    # AdaLayerNormZero (silu(t) already hoisted to t_act)
    emb = linear(t_act, blk["adaln_w"], blk["adaln_b"], out_dtype=jnp.float32)  # (B, 6*dim)
    shift_msa, scale_msa, gate_msa, shift_mlp, scale_mlp, gate_mlp = jnp.split(emb, 6, axis=-1)
    norm = adaln_modulate(x, scale_msa, shift_msa)

    # Attention: fused QKV projection (reads `norm` once), per-head RoPE, flash attn
    qkv = linear(norm, blk["qkv_w"], blk["qkv_b"])                 # (B, N, 3*inner)
    q, k, v = jnp.split(qkv, 3, axis=-1)
    q = apply_rope(q.reshape(B, N, heads, dim_head), cos, sin)
    k = apply_rope(k.reshape(B, N, heads, dim_head), cos, sin)
    v = v.reshape(B, N, heads, dim_head)
    attn = flash_attention(q.transpose(0, 2, 1, 3),
                           k.transpose(0, 2, 1, 3),
                           v.transpose(0, 2, 1, 3))                # (B, H, N, Dh)
    attn = attn.transpose(0, 2, 1, 3).reshape(B, N, inner)
    # o-projection with gated residual fused in the matmul epilogue
    x = linear_gated(attn, blk["o_w"], blk["o_b"], gate_msa, x)

    # FeedForward: GELU fused into ff1 epilogue, gated residual fused into ff2 epilogue
    normff = adaln_modulate(x, scale_mlp, shift_mlp)
    ff = linear(normff, blk["ff1_w"], blk["ff1_b"], activation="gelu")
    x = linear_gated(ff, blk["ff2_w"], blk["ff2_b"], gate_mlp, x)
    return x


def dit_forward(params, x, cond, spk, text, time, *, heads, dim_head,
                drop_audio_cond=False, drop_text=False):
    B, N, mel_dim = x.shape

    time = jnp.asarray(time, jnp.float32)
    if time.ndim == 0:
        time = jnp.broadcast_to(time, (B,))

    # --- TimestepEmbedding: sinusoidal(256) -> Linear -> SiLU -> Linear ---
    half = 128
    emb_scale = math.log(10000.0) / (half - 1)
    freqs_t = jnp.exp(jnp.arange(half, dtype=jnp.float32) * -emb_scale)
    args = 1000.0 * time[:, None] * freqs_t[None, :]
    t_freq = jnp.concatenate([jnp.sin(args), jnp.cos(args)], axis=-1)   # (B, 256)
    t = linear(t_freq, params["time_mlp1_w"], params["time_mlp1_b"], activation="silu")
    t = linear(t, params["time_mlp2_w"], params["time_mlp2_b"], out_dtype=jnp.float32)
    t_act = silu(t)                      # hoisted: shared by all AdaLN layers

    # --- TextEmbedding (conv_layers=0): shift-by-1, crop, pad, optional drop, lookup ---
    text_ids = text + 1
    text_ids = text_ids[:, :N]
    pad = N - text_ids.shape[1]
    text_ids = jnp.pad(text_ids, ((0, 0), (0, pad)))
    if drop_text:
        text_ids = jnp.zeros_like(text_ids)
    # TODO(synk): embedding gather kept in plain JAX (tiny table, no clean Pallas gather win).
    text_embed = jnp.take(params["text_embed_table"], text_ids, axis=0)  # (B, N, text_dim)

    # --- InputEmbedding ---
    if drop_audio_cond:
        cond = jnp.zeros_like(cond)
        spk = jnp.zeros_like(spk)
    # TODO(synk): full ECAPA_TDNN speaker encoder not translated; stand-in = mean-pool + linear(80->128).
    pooled = jnp.mean(cond, axis=1)                                      # (B, 80)
    cond_enc = linear(pooled, params["spk_enc_w"], params["spk_enc_b"])  # (B, 128)
    cond_rep = jnp.broadcast_to(cond_enc[:, None, :], (B, N, 128)).astype(jnp.float32)
    h = jnp.concatenate([x.astype(jnp.float32), cond_rep,
                         text_embed.astype(jnp.float32),
                         spk.astype(jnp.float32)], axis=-1)              # (B, N, mel+128+text+192)
    x = linear(h, params["proj_w"], params["proj_b"])                    # (B, N, dim) bf16

    # --- rotary cos/sin computed once per forward ---
    cos, sin = rope_cos_sin(N, dim_head)

    # --- transformer blocks ---
    for blk in params["blocks"]:
        x = dit_block(x, t_act, cos, sin, blk, heads=heads, dim_head=dim_head)

    # --- AdaLayerNormZero_Final + proj_out ---
    emb = linear(t_act, params["norm_out_w"], params["norm_out_b"], out_dtype=jnp.float32)
    scale, shift = jnp.split(emb, 2, axis=-1)
    x = adaln_modulate(x, scale, shift)
    out = linear(x, params["proj_out_w"], params["proj_out_b"], out_dtype=jnp.float32)
    return out


# ----------------------------- Demo -----------------------------

if __name__ == "__main__":
    key = jax.random.PRNGKey(0)
    dim, depth, heads, dim_head, ff_mult = 64, 2, 2, 32, 4
    mel_dim, text_dim, text_num_embeds = 32, 32, 16
    B, N, NT = 2, 16, 10

    kp, kx, kc, ks, kt = jax.random.split(key, 5)
    params = init_params(kp, dim=dim, depth=depth, heads=heads, dim_head=dim_head,
                         ff_mult=ff_mult, mel_dim=mel_dim,
                         text_num_embeds=text_num_embeds, text_dim=text_dim)

    x = jax.random.normal(kx, (B, N, mel_dim), jnp.float32)       # noisy mel ('b n d')
    cond = jax.random.normal(kc, (B, N, 80), jnp.float32)         # speaker-cond mel (80-dim)
    spk = jax.random.normal(ks, (B, N, 192), jnp.float32)         # speaker embedding stream
    text = jax.random.randint(kt, (B, NT), 0, text_num_embeds)    # text tokens ('b nt')
    time = jnp.asarray(0.5, jnp.float32)                          # scalar timestep

    out = dit_forward(params, x, cond, spk, text, time,
                      heads=heads, dim_head=dim_head,
                      drop_audio_cond=False, drop_text=False)
    out = jax.block_until_ready(out)
    assert out.shape == (B, N, mel_dim), out.shape
    assert bool(jnp.all(jnp.isfinite(out)))
    print("KERNEL_OK")
</pallas_src>

<mosaic_0001>
module attributes {stable_mosaic.version = 11 : i64} {
  func.func @_matmul_kernel(%arg0: i32, %arg1: i32, %arg2: i32, %arg3: i32, %arg4: memref<1x2x256xbf16, #tpu.memory_space<vmem>>, %arg5: memref<256x64xbf16, #tpu.memory_space<vmem>>, %arg6: memref<1x64xf32, #tpu.memory_space<vmem>>, %arg7: memref<1x2x64xbf16, #tpu.memory_space<vmem>>, %arg8: memref<2x64xf32, #tpu.memory_space<vmem>>) attributes {dimension_semantics = [#tpu.dimension_semantics<parallel>, #tpu.dimension_semantics<parallel>, #tpu.dimension_semantics<parallel>, #tpu.dimension_semantics<arbitrary>], iteration_bounds = array<i64: 1, 1, 1, 1>, scalar_prefetch = 0 : i64, scratch_operands = 1 : i64, tpu.core_type = #tpu.core_type<tc>, window_params = [{transform_indices = @transform_0, window_bounds = array<i64: 1, 2, 256>}, {transform_indices = @transform_1, window_bounds = array<i64: 256, 64>}, {transform_indices = @transform_2, window_bounds = array<i64: 1, 64>}, {transform_indices = @transform_3, window_bounds = array<i64: 1, 2, 64>}]} {
    %c0_i32 = arith.constant 0 : i32
    %0 = arith.cmpi eq, %arg3, %c0_i32 : i32
    %1 = arith.extui %0 : i1 to i32
    %c0_i32_0 = arith.constant 0 : i32
    %2 = arith.cmpi ne, %1, %c0_i32_0 : i32
    scf.if %2 {
      %cst_11 = arith.constant 0.000000e+00 : f32
      %13 = vector.broadcast %cst_11 : f32 to vector<2x64xf32>
      %c0_12 = arith.constant 0 : index
      %c0_13 = arith.constant 0 : index
      %14 = vector.load %arg8[%c0_12, %c0_13] : memref<2x64xf32, #tpu.memory_space<vmem>>, vector<2x64xf32>
      tpu.vector_store %arg8[%c0_12, %c0_13], %13 {strides = array<i32>} : memref<2x64xf32, #tpu.memory_space<vmem>>, vector<2x64xf32>,
    } else {
    }
    %c0 = arith.constant 0 : index
    %c0_1 = arith.constant 0 : index
    %3 = vector.load %arg8[%c0, %c0_1] : memref<2x64xf32, #tpu.memory_space<vmem>>, vector<2x64xf32>
    %c0_2 = arith.constant 0 : index
    %c0_3 = arith.constant 0 : index
    %c0_4 = arith.constant 0 : index
    %4 = vector.load %arg4[%c0_2, %c0_3, %c0_4] : memref<1x2x256xbf16, #tpu.memory_space<vmem>>, vector<1x2x256xbf16>
    %5 = vector.shape_cast %4 : vector<1x2x256xbf16> to vector<2x256xbf16>
    %c0_5 = arith.constant 0 : index
    %c0_6 = arith.constant 0 : index
    %6 = vector.load %arg5[%c0_5, %c0_6] : memref<256x64xbf16, #tpu.memory_space<vmem>>, vector<256x64xbf16>
    %cst = arith.constant dense<0.000000e+00> : vector<2x64xf32>
    %7 = tpu.matmul %5, %6, %cst {dimension_numbers = #tpu.dot_dimension_numbers<[1], [0], [0], [1], [0, 0, 1, 1], [], []>} : vector<2x256xbf16>, vector<256x64xbf16>, vector<2x64xf32> -> vector<2x64xf32>
    %8 = arith.addf %3, %7 : vector<2x64xf32>
    %c0_7 = arith.constant 0 : index
    %c0_8 = arith.constant 0 : index
    %9 = vector.load %arg8[%c0_7, %c0_8] : memref<2x64xf32, #tpu.memory_space<vmem>>, vector<2x64xf32>
    tpu.vector_store %arg8[%c0_7, %c0_8], %8 {strides = array<i32>} : memref<2x64xf32, #tpu.memory_space<vmem>>, vector<2x64xf32>,
    %c0_i32_9 = arith.constant 0 : i32
    %10 = arith.cmpi eq, %arg3, %c0_i32_9 : i32
    %11 = arith.extui %10 : i1 to i32
    %c0_i32_10 = arith.constant 0 : i32
    %12 = arith.cmpi ne, %11, %c0_i32_10 : i32
    scf.if %12 {
      %c0_11 = arith.constant 0 : index
      %c0_12 = arith.constant 0 : index
      %13 = vector.load %arg8[%c0_11, %c0_12] : memref<2x64xf32, #tpu.memory_space<vmem>>, vector<2x64xf32>
      %c0_13 = arith.constant 0 : index
      %c0_14 = arith.constant 0 : index
      %14 = vector.load %arg6[%c0_13, %c0_14] : memref<1x64xf32, #tpu.memory_space<vmem>>, vector<1x64xf32>
      %15 = vector.broadcast %14 : vector<1x64xf32> to vector<2x64xf32>
      %16 = arith.addf %13, %15 : vector<2x64xf32>
      %17 = arith.negf %16 : vector<2x64xf32>
      %18 = math.exp %17 : vector<2x64xf32>
      %cst_15 = arith.constant 1.000000e+00 : f32
      %19 = vector.broadcast %cst_15 : f32 to vector<2x64xf32>
      %20 = arith.addf %19, %18 : vector<2x64xf32>
      %21 = arith.divf %19, %20 : vector<2x64xf32>
      %22 = arith.mulf %16, %21 : vector<2x64xf32>
      %23 = arith.truncf %22 : vector<2x64xf32> to vector<2x64xbf16>
      %c0_16 = arith.constant 0 : index
      %c0_17 = arith.constant 0 : index
      %c0_18 = arith.constant 0 : index
      %24 = vector.load %arg7[%c0_16, %c0_17, %c0_18] : memref<1x2x64xbf16, #tpu.memory_space<vmem>>, vector<1x2x64xbf16>
      %25 = vector.shape_cast %24 : vector<1x2x64xbf16> to vector<2x64xbf16>
      %26 = vector.shape_cast %23 : vector<2x64xbf16> to vector<1x2x64xbf16>
      tpu.vector_store %arg7[%c0_16, %c0_17, %c0_18], %26 {strides = array<i32>} : memref<1x2x64xbf16, #tpu.memory_space<vmem>>, vector<1x2x64xbf16>,
    } else {
    }
    return
  }
  func.func @transform_0(%arg0: i32, %arg1: i32, %arg2: i32, %arg3: i32) -> (i32, i32, i32) {
    %c0_i32 = arith.constant 0 : i32
    return %arg0, %arg1, %arg3 : i32, i32, i32
  }
  func.func @transform_1(%arg0: i32, %arg1: i32, %arg2: i32, %arg3: i32) -> (i32, i32) {
    %c0_i32 = arith.constant 0 : i32
    return %arg3, %arg2 : i32, i32
  }
  func.func @transform_2(%arg0: i32, %arg1: i32, %arg2: i32, %arg3: i32) -> (i32, i32) {
    %c0_i32 = arith.constant 0 : i32
    %c0_i32_0 = arith.constant 0 : i32
    return %c0_i32, %arg2 : i32, i32
  }
  func.func @transform_3(%arg0: i32, %arg1: i32, %arg2: i32, %arg3: i32) -> (i32, i32, i32) {
    %c0_i32 = arith.constant 0 : i32
    return %arg0, %arg1, %arg2 : i32, i32, i32
  }
}

</mosaic_0001>

<llo_original>
// kernel: tpu_custom_call.1
$region0: #{tpu_custom_call.1}
  #allocation0 [shape = 'u32[]', space=smem, size = 0x4, offset = 0x4, fixed_abs, tag = 'smem constant byte address 0x4 - core index']
  #allocation1 [shape = 'u32[144,128]{1,0:T(1,128)}', space=vmem, size = 0x12000, scoped, tag = 'internal scratch']
  #allocation2 [shape = 'f32[2,64]{1,0:T(2,128)}', space=vmem, size = 0x400, scoped, tag = 'scratch operand']
  %s0 = inlined_call_operand.vmem [shape: bf16[1,2,256], index: 0, kind: input, shape index: {}]
  %s1 = inlined_call_operand.vmem [shape: bf16[256,64], index: 1, kind: input, shape index: {}]
  %s2 = inlined_call_operand.vmem [shape: f32[1,64], index: 2, kind: input, shape index: {}]
  %s3 = inlined_call_operand.hbm [shape: bf16[1,2,64], index: 3, kind: output, shape index: {}]
  %s4 = sld [smem:[#allocation0]]
  $region30: #{tpu_custom_call.1} parent=0
    _
  %s6 = ssub.s32 1, %s4
  %s7 = scalar_select 0, %s6, %s4
  $region1: #{tpu_custom_call.1} parent=0
    #allocation3 [shape = 'u8[512]{0}', space=vmem, size = 0x400, scoped, tag = 'output window, operand 0, single buffered']
    #allocation4 [shape = 's32[1]{0}', space=sflag, size = 0x4, scoped, tag = 'scoped memory for tpu_custom_call.1']
    %8 = vsyncpa [#allocation4], 0
    // Predicated region
    $region2: #{tpu_custom_call.1} parent=1 // pred_check
      _
    $region3: #{tpu_custom_call.1} parent=1 // pred_check_branch
      %10 = sbr.rel (0) target = $region5
    $region4: #{tpu_custom_call.1} parent=1 // pred_region
      _
    $region5: #{tpu_custom_call.1} parent=1 // pred_fallthru
      _
    // Predicated region
    $region6: #{tpu_custom_call.1} parent=1 // pred_check
      _
    $region7: #{tpu_custom_call.1} parent=1 // pred_check_branch
      %12 = sbr.rel (0) target = $region9
    $region8: #{tpu_custom_call.1} parent=1 // pred_region
      _
    $region9: #{tpu_custom_call.1} parent=1 // pred_fallthru
      _
    // Predicated region
    $region10: #{tpu_custom_call.1} parent=1 // pred_check
      _
    $region11: #{tpu_custom_call.1} parent=1 // pred_check_branch
      %14 = sbr.rel (0) target = $region13
    $region12: #{tpu_custom_call.1} parent=1 // pred_region
      _
    $region13: #{tpu_custom_call.1} parent=1 // pred_fallthru
      _
    %p16 = scmp.eq.s32.totalorder 0, 0
    // Predicated region
    $region14: #{tpu_custom_call.1} parent=1 // pred_check
      %p17 = pneg %p16
    $region15: #{tpu_custom_call.1} parent=1 // pred_check_branch
      %19 = sbr.rel (%p17) target = $region17
    $region16: #{tpu_custom_call.1} parent=1 // pred_region
      %vm20 = vcmask 517120
      %21 = vst.msk [vmem:[#allocation2] sm:$0x3] %vm20, 0.0
    $region17: #{tpu_custom_call.1} parent=1 // pred_fallthru
      _
    %v22 = vld [vmem:[#allocation2] sm:$0x3]
    %v23 = vld [vmem:[%s0] sm:$0x3]
    %v24 = vld [vmem:[%s1] sm:$0xf]
    %v25 = vld [vmem:[%s1 + $0x4] sm:$0xf]
    %v26 = vld [vmem:[%s1 + $0x8] sm:$0xf]
    %v27 = vld [vmem:[%s1 + $0xc] sm:$0xf]
    %v28 = vld [vmem:[%s1 + $0x10] sm:$0xf]
    %v29 = vld [vmem:[%s1 + $0x14] sm:$0xf]
    %v30 = vld [vmem:[%s1 + $0x18] sm:$0xf]
    %v31 = vld [vmem:[%s1 + $0x1c] sm:$0xf]
    %v32 = vld [vmem:[%s1 + $0x20] sm:$0xf]
    %v33 = vld [vmem:[%s1 + $0x24] sm:$0xf]
    %v34 = vld [vmem:[%s1 + $0x28] sm:$0xf]
    %v35 = vld [vmem:[%s1 + $0x2c] sm:$0xf]
    %v36 = vld [vmem:[%s1 + $0x30] sm:$0xf]
    %v37 = vld [vmem:[%s1 + $0x34] sm:$0xf]
    %v38 = vld [vmem:[%s1 + $0x38] sm:$0xf]
    %v39 = vld [vmem:[%s1 + $0x3c] sm:$0xf]
    %v40 = vld [vmem:[%s1 + $0x40] sm:$0xf]
    %v41 = vld [vmem:[%s1 + $0x44] sm:$0xf]
    %v42 = vld [vmem:[%s1 + $0x48] sm:$0xf]
    %v43 = vld [vmem:[%s1 + $0x4c] sm:$0xf]
    %v44 = vld [vmem:[%s1 + $0x50] sm:$0xf]
    %v45 = vld [vmem:[%s1 + $0x54] sm:$0xf]
    %v46 = vld [vmem:[%s1 + $0x58] sm:$0xf]
    %v47 = vld [vmem:[%s1 + $0x5c] sm:$0xf]
    %v48 = vld [vmem:[%s1 + $0x60] sm:$0xf]
    %v49 = vld [vmem:[%s1 + $0x64] sm:$0xf]
    %v50 = vld [vmem:[%s1 + $0x68] sm:$0xf]
    %v51 = vld [vmem:[%s1 + $0x6c] sm:$0xf]
    %v52 = vld [vmem:[%s1 + $0x70] sm:$0xf]
    %v53 = vld [vmem:[%s1 + $0x74] sm:$0xf]
    %v54 = vld [vmem:[%s1 + $0x78] sm:$0xf]
    %v55 = vld [vmem:[%s1 + $0x7c] sm:$0xf]
    %v58 = vunpack.c.l.s4 1966171168
    %v59 = vunpack.c.0.s8 %v58
    %v60 = vlaneseq
    %v61 = vshrl.u32 %v60, 7
    %v62 = vsub.s32 %v59, %v61
    %v63 = vrot.slane %v23, %v62
    %v64 = vcombine.high %v63, %v63
    %v66 = vunpack.c.l.s4 1966171168
    %v67 = vunpack.c.0.s8 %v66
    %v68 = vlaneseq
    %v69 = vshrl.u32 %v68, 7
    %v70 = vsub.s32 %v67, %v69
    %v71 = vrot.slane %v63, %v70
    %v73 = vunpack.c.l.s4 1966171168
    %v74 = vunpack.c.0.s8 %v73
    %v75 = vlaneseq
    %v76 = vshrl.u32 %v75, 7
    %v77 = vsub.s32 %v74, %v76
    %v78 = vrot.slane %v64, %v77
    %v113 = vunpack.c.l.b16 %v24
    %v114 = vunpack.c.l.b16 %v25
    %v115 = vunpack.c.l.b16 %v26
    %v116 = vunpack.c.l.b16 %v27
    %v117 = vunpack.c.l.b16 %v28
    %v118 = vunpack.c.l.b16 %v29
    %v119 = vunpack.c.l.b16 %v30
    %v120 = vunpack.c.l.b16 %v31
    %v121 = vunpack.c.l.b16 %v32
    %v122 = vunpack.c.l.b16 %v33
    %v123 = vunpack.c.l.b16 %v34
    %v124 = vunpack.c.l.b16 %v35
    %v125 = vunpack.c.l.b16 %v36
    %v126 = vunpack.c.l.b16 %v37
    %v127 = vunpack.c.l.b16 %v38
    %v128 = vunpack.c.l.b16 %v39
    %v129 = vunpack.c.l.b16 %v40
    %v130 = vunpack.c.l.b16 %v41
    %v131 = vunpack.c.l.b16 %v42
    %v132 = vunpack.c.l.b16 %v43
    %v133 = vunpack.c.l.b16 %v44
    %v134 = vunpack.c.l.b16 %v45
    %v135 = vunpack.c.l.b16 %v46
    %v136 = vunpack.c.l.b16 %v47
    %v137 = vunpack.c.l.b16 %v48
    %v138 = vunpack.c.l.b16 %v49
    %v139 = vunpack.c.l.b16 %v50
    %v140 = vunpack.c.l.b16 %v51
    %v141 = vunpack.c.l.b16 %v52
    %v142 = vunpack.c.l.b16 %v53
    %v143 = vunpack.c.l.b16 %v54
    %v144 = vunpack.c.l.b16 %v55
    %v145 = vpack.c.b16 %v114, %v113
    %v146 = vpack.c.b16 %v116, %v115
    %v147 = vpack.c.b16 %v118, %v117
    %v148 = vpack.c.b16 %v120, %v119
    %v149 = vpack.c.b16 %v122, %v121
    %v150 = vpack.c.b16 %v124, %v123
    %v151 = vpack.c.b16 %v126, %v125
    %v152 = vpack.c.b16 %v128, %v127
    %v153 = vpack.c.b16 %v130, %v129
    %v154 = vpack.c.b16 %v132, %v131
    %v155 = vpack.c.b16 %v134, %v133
    %v156 = vpack.c.b16 %v136, %v135
    %v157 = vpack.c.b16 %v138, %v137
    %v158 = vpack.c.b16 %v140, %v139
    %v159 = vpack.c.b16 %v142, %v141
    %v160 = vpack.c.b16 %v144, %v143
    %177 = vmatprep.subr.bf16.mxu0 0
    %178 = vmatpush1.bf16.msra.mxu0 %v145
    %179 = vmatprep.subr.bf16.mxu0 0
    %180 = vmatpush1.bf16.msra.mxu0 %v146
    %181 = vmatprep.subr.bf16.mxu0 0
    %182 = vmatpush1.bf16.msra.mxu0 %v147
    %183 = vmatprep.subr.bf16.mxu0 0
    %184 = vmatpush1.bf16.msra.mxu0 %v148
    %185 = vmatprep.subr.bf16.mxu0 0
    %186 = vmatpush1.bf16.msra.mxu0 %v149
    %187 = vmatprep.subr.bf16.mxu0 0
    %188 = vmatpush1.bf16.msra.mxu0 %v150
    %189 = vmatprep.subr.bf16.mxu0 0
    %190 = vmatpush1.bf16.msra.mxu0 %v151
    %191 = vmatprep.subr.bf16.mxu0 0
    %192 = vmatpush1.bf16.msra.mxu0 %v152
    %193 = vmatprep.subr.bf16.mxu0 0
    %194 = vmatpush1.bf16.msra.mxu0 %v153
    %195 = vmatprep.subr.bf16.mxu0 0
    %196 = vmatpush1.bf16.msra.mxu0 %v154
    %197 = vmatprep.subr.bf16.mxu0 0
    %198 = vmatpush1.bf16.msra.mxu0 %v155
    %199 = vmatprep.subr.bf16.mxu0 0
    %200 = vmatpush1.bf16.msra.mxu0 %v156
    %201 = vmatprep.subr.bf16.mxu0 0
    %202 = vmatpush1.bf16.msra.mxu0 %v157
    %203 = vmatprep.subr.bf16.mxu0 0
    %204 = vmatpush1.bf16.msra.mxu0 %v158
    %205 = vmatprep.subr.bf16.mxu0 0
    %206 = vmatpush1.bf16.msra.mxu0 %v159
    %207 = vmatprep.subr.bf16.mxu0 0
    %208 = vmatpush1.bf16.msra.mxu0 %v160
    %209 = vmatprep.mubr.bf16.mxu0 %v78
    %210 = vmatmul.mubr.bf16.gmra.mrb[0].mxu0 %v71
    %v211 = vpop.f32.mrb[0].mxu0
    %v212 = vadd.f32 0.0, %v211
    %v213 = vpop.f32.mrb[0].mxu0
    %v214 = vpop.f32.mrb[0].mxu0
    %v215 = vpop.f32.mrb[0].mxu0
    %216 = vdwg.mxu0
    %v217 = vadd.f32 %v22, %v212
    %vm218 = vcmask 517120
    %219 = vst.msk [vmem:[#allocation2] sm:$0x3] %vm218, %v217
    // Predicated region
    $region18: #{tpu_custom_call.1} parent=1 // pred_check
      %p220 = pneg %p16
    $region19: #{tpu_custom_call.1} parent=1 // pred_check_branch
      %222 = sbr.rel (%p220) target = $region21
    $region20: #{tpu_custom_call.1} parent=1 // pred_region
      %v223 = vld [vmem:[#allocation2] sm:$0x3]
      %v224 = vld [vmem:[%s2] sm:$0x1]
      %v226 = vlaneseq
      %v227 = vshrl.u32 %v226, 7
      %v228 = vsub.s32 0, %v227
      %v229 = vrot.slane %v224, %v228
      %v231 = vadd.f32 %v223, %v229
      %v232 = vxor.u32 %v231, 2147483648
      %v233 = vmul.f32 %v232, 1.442695
      %v234 = vpow.pop %v233
      %v235 = vadd.f32 %v234, 1.0
      %v236 = vrcp.pop %v235
      %v237 = vmul.f32 1.0, %v236
      %v238 = vmul.f32 %v231, %v237
      %v239 = vpack.c.bf16 %v238, %v238
      %vm240 = vcmask 516096
      %241 = vst.msk [vmem:[#allocation3] sm:$0x1] %vm240, %v239
    $region21: #{tpu_custom_call.1} parent=1 // pred_fallthru
      _
    // Predicated region
    $region22: #{tpu_custom_call.1} parent=1 // pred_check
      _
    $region23: #{tpu_custom_call.1} parent=1 // pred_check_branch
      %243 = sbr.rel (0) target = $region25
    $region24: #{tpu_custom_call.1} parent=1 // pred_region
      %s245 = ssub.s32 16, 16
      %246 = vsyncadd [#allocation4], %s245
      %s248 = sshll.u32 [#allocation3], 4
      %s249 = int_to_ptr.vmem [resolvable:$true] %s248
      %251 = dma.vmem_to_hbm [thread:$0]  %s249, 16, %s3, [#allocation4]
    $region25: #{tpu_custom_call.1} parent=1 // pred_fallthru
      _
    // Predicated region
    $region26: #{tpu_custom_call.1} parent=1 // pred_check
      _
    $region27: #{tpu_custom_call.1} parent=1 // pred_check_branch
      %253 = sbr.rel (0) target = $region29
    $region28: #{tpu_custom_call.1} parent=1 // pred_region
      %254 = dma.done [#allocation4], 16
    $region29: #{tpu_custom_call.1} parent=1 // pred_fallthru
      _
    %255 = vsyncpa [#allocation4], 1

</llo_original>
